<compile_context>
chip_gen: v6e
topology: v6e:2x2x1
jax: 0.10.0
libtpu: 0.0.40
codegen_flags: <defaults>
</compile_context>

<pallas_src>
import functools

import jax
import jax.numpy as jnp
from jax.experimental import pallas as pl
from jax.experimental.pallas import tpu as pltpu


def make_divisible(value, divisor=8, min_value=None, min_ratio=0.9):
    """Same as mmcv/mmseg make_divisible."""
    if min_value is None:
        min_value = divisor
    new_value = max(min_value, int(value + divisor / 2) // divisor * divisor)
    if new_value < min_ratio * value:
        new_value += divisor
    return new_value


def _se_kernel(x_ref, w1_ref, b1_ref, w2_ref, b2_ref, o_ref, *, inv_hw):
    """One (Bt, C, HWp) batch-block per grid step, native NCHW layout.

    x_ref : (Bt, C, HWp)   input tile in VMEM (lane axis = padded H*W)
    w1_ref: (C, Cmid)      1x1-conv #1 weight as a dense matrix
    b1_ref: (1, Cmid)
    w2_ref: (Cmid, C)      1x1-conv #2 weight as a dense matrix
    b2_ref: (1, C)
    o_ref : (Bt, C, HWp)
    inv_hw: 1 / (true H*W); spatial padding is zero so the sum is unaffected.
    """
    # Squeeze: global average pool over the spatial (lane) axis; accumulate in
    # f32 via the reduction rather than holding a full-tile f32 cast live.
    pooled = jnp.sum(x_ref[...], axis=-1, dtype=jnp.float32) * inv_hw   # (Bt, C)

    # Excite: two tiny MXU matmuls (the 1x1 convs) on the pooled matrix.
    h = jnp.dot(pooled, w1_ref[...], preferred_element_type=jnp.float32)
    h = jnp.maximum(h + b1_ref[...], 0.0)                               # ReLU
    s = jnp.dot(h, w2_ref[...], preferred_element_type=jnp.float32)
    # HSigmoid(bias=3.0, divisor=6.0): clamp((s + 3) / 6, 0, 1)
    s = jnp.clip((s + b2_ref[...] + 3.0) * (1.0 / 6.0), 0.0, 1.0)       # (Bt, C)

    # Re-weight: per-(batch, channel) scale broadcast over the HW lane axis.
    # Re-read x_ref so the rescale streams load->mul->store (short live range)
    # and multiply in x's native dtype (bf16 stays bf16, like PyTorch bf16).
    scale = s.astype(x_ref.dtype)[:, :, None]
    o_ref[...] = (x_ref[...] * scale).astype(o_ref.dtype)


@functools.lru_cache(maxsize=1)
def _chip_profile():
    """Return (per-core VMEM capacity bytes, tensorcores per chip)."""
    vmem_cap = None
    try:
        vmem_cap = int(pltpu.get_tpu_info().vmem_capacity_bytes)
    except Exception:
        pass
    if vmem_cap is None:
        kind = ""
        try:
            kind = jax.devices()[0].device_kind.lower()
        except Exception:
            pass
        # v7-class chips: 64 MiB VMEM per TensorCore; v5e/v6e: 128 MiB.
        vmem_cap = (64 << 20) if "v7" in kind else (128 << 20)
    # 64 MiB/TC chips (v7x) have 2 TensorCores sharing the grid; v5e/v6e have 1.
    num_cores = 2 if vmem_cap <= (64 << 20) else 1
    return vmem_cap, num_cores


def _pick_batch_tile(batch, per_batch_bytes, vmem_cap, num_cores):
    """Images per grid step.

    Live VMEM per step ~= 4x the x block (input + output blocks, each
    double-buffered by the BlockSpec pipeline) plus small f32 scratch, so the
    block budget is derived from 4x <= ~45% of VMEM capacity.
    """
    budget = int(vmem_cap * 0.45)          # headroom for scratch / compiler temps
    max_block_bytes = budget // 4
    if per_batch_bytes > max_block_bytes:
        # TODO(synk): two-phase path (spatial-split pooling pass with a VMEM
        # accumulator, then a rescale pass) for feature maps too large to hold
        # one image per grid step; the threshold is lowest on v7x.
        raise ValueError(
            "SELayer Pallas kernel: a single image needs "
            f"{per_batch_bytes} bytes (x4 double-buffered in+out) but the VMEM "
            f"budget is {budget} bytes; the two-phase spatial-split path is "
            "required for this shape.")
    cap = max(1, max_block_bytes // per_batch_bytes)
    divisors = [d for d in range(1, batch + 1) if batch % d == 0 and d <= cap]
    if num_cores >= 2:
        # Keep the grid-step count EVEN so both TensorCores stay busy.
        even = [d for d in divisors if (batch // d) % 2 == 0]
        if even:
            return max(even)
    # Single-TC chips: just the biggest block that fits (no forced >=2 steps).
    return max(divisors)


@jax.jit
def se_layer(x_nchw, w1, b1, w2, b2):
    """SELayer forward. x_nchw: (B, C, H, W), same layout as PyTorch."""
    B, C, H, W = x_nchw.shape
    HW = H * W
    HWp = max(128, ((HW + 127) // 128) * 128)     # lane-dense last dim
    cmid = w1.shape[1]

    # Free contiguous reshape; zero-pad the flattened spatial axis to a
    # multiple of 128 so the rescale writeback is full-lane.
    x3 = x_nchw.reshape(B, C, HW)
    if HWp != HW:
        x3 = jnp.pad(x3, ((0, 0), (0, 0), (0, HWp - HW)))

    vmem_cap, num_cores = _chip_profile()
    bt = _pick_batch_tile(B, C * HWp * x_nchw.dtype.itemsize, vmem_cap, num_cores)
    grid = (B // bt,)

    kernel = functools.partial(_se_kernel, inv_hw=1.0 / HW)

    out3 = pl.pallas_call(
        kernel,
        out_shape=jax.ShapeDtypeStruct((B, C, HWp), x_nchw.dtype),
        grid_spec=pltpu.PrefetchScalarGridSpec(
            num_scalar_prefetch=0,
            grid=grid,
            in_specs=[
                pl.BlockSpec((bt, C, HWp), lambda b: (b, 0, 0)),
                pl.BlockSpec((C, cmid), lambda b: (0, 0)),
                pl.BlockSpec((1, cmid), lambda b: (0, 0)),
                pl.BlockSpec((cmid, C), lambda b: (0, 0)),
                pl.BlockSpec((1, C), lambda b: (0, 0)),
            ],
            out_specs=pl.BlockSpec((bt, C, HWp), lambda b: (b, 0, 0)),
        ),
        compiler_params=pltpu.CompilerParams(
            dimension_semantics=("parallel",),
            # Explicit scoped-VMEM limit: ~75% of physical capacity
            # (96 MiB on v5e/v6e, 48 MiB on v7x) -- comfortably above the
            # 45%-of-capacity block budget used by _pick_batch_tile.
            vmem_limit_bytes=int(vmem_cap * 3 // 4),
        ),
    )(x3, w1, b1, w2, b2)

    if HWp != HW:
        out3 = out3[:, :, :HW]
    return out3.reshape(B, C, H, W)


def se_layer_reference(x_nchw, w1, b1, w2, b2):
    """Pure-JAX reference with identical semantics (for validation)."""
    xf = x_nchw.astype(jnp.float32)
    pooled = jnp.mean(xf, axis=(2, 3))                     # (B, C)
    h = jnp.maximum(pooled @ w1 + b1, 0.0)                 # ReLU
    s = jnp.clip((h @ w2 + b2 + 3.0) / 6.0, 0.0, 1.0)      # HSigmoid
    return (xf * s[:, :, None, None]).astype(x_nchw.dtype)


if __name__ == "__main__":
    # Module config: channels=32, ratio=16 (default) -> Cmid = make_divisible(2, 8) = 8
    channels = 32
    ratio = 16
    cmid = make_divisible(channels // ratio, 8)

    key = jax.random.PRNGKey(0)
    kx, k1, kb1, k2, kb2, kx2 = jax.random.split(key, 6)

    # Deterministic parameter init.
    # PyTorch conv1 weight is (Cmid, C, 1, 1); stored here as dense (C, Cmid).
    w1 = (jax.random.normal(k1, (channels, cmid), dtype=jnp.float32)
          * (1.0 / jnp.sqrt(channels)))
    b1 = jax.random.normal(kb1, (1, cmid), dtype=jnp.float32) * 0.1
    # PyTorch conv2 weight is (C, Cmid, 1, 1); stored here as dense (Cmid, C).
    w2 = (jax.random.normal(k2, (cmid, channels), dtype=jnp.float32)
          * (1.0 / jnp.sqrt(cmid)))
    b2 = jax.random.normal(kb2, (1, channels), dtype=jnp.float32) * 0.1

    # Case 1: lane-dense spatial size (16*16 = 256), f32 -- exact path.
    x = jax.random.normal(kx, (2, channels, 16, 16), dtype=jnp.float32)
    out = jax.block_until_ready(se_layer(x, w1, b1, w2, b2))
    ref = se_layer_reference(x, w1, b1, w2, b2)
    assert out.shape == x.shape and out.dtype == x.dtype
    assert jnp.allclose(out, ref, atol=1e-5, rtol=1e-5), "f32 mismatch"

    # Case 2: non-multiple-of-128 spatial size (14*14 = 196) exercises padding.
    x2 = jax.random.normal(kx2, (2, channels, 14, 14), dtype=jnp.float32)
    out2 = jax.block_until_ready(se_layer(x2, w1, b1, w2, b2))
    ref2 = se_layer_reference(x2, w1, b1, w2, b2)
    assert jnp.allclose(out2, ref2, atol=1e-5, rtol=1e-5), "padded-HW mismatch"

    # Case 3: bf16 input -- rescale multiply runs in bf16 (matches PyTorch bf16
    # arithmetic); reference computes in f32 then casts, so use a bf16 tolerance.
    xb = x.astype(jnp.bfloat16)
    outb = jax.block_until_ready(se_layer(xb, w1, b1, w2, b2))
    refb = se_layer_reference(xb, w1, b1, w2, b2)
    assert outb.dtype == jnp.bfloat16
    assert jnp.allclose(outb.astype(jnp.float32), refb.astype(jnp.float32),
                        atol=3e-2, rtol=3e-2), "bf16 mismatch"

    print("KERNEL_OK")
</pallas_src>

<mosaic_0001>
module attributes {stable_mosaic.version = 11 : i64} {
  func.func @_se_kernel(%arg0: i32, %arg1: memref<2x32x256xf32, #tpu.memory_space<vmem>>, %arg2: memref<32x8xf32, #tpu.memory_space<vmem>>, %arg3: memref<1x8xf32, #tpu.memory_space<vmem>>, %arg4: memref<8x32xf32, #tpu.memory_space<vmem>>, %arg5: memref<1x32xf32, #tpu.memory_space<vmem>>, %arg6: memref<2x32x256xf32, #tpu.memory_space<vmem>>) attributes {dimension_semantics = [#tpu.dimension_semantics<parallel>], iteration_bounds = array<i64: 1>, scalar_prefetch = 0 : i64, scratch_operands = 0 : i64, tpu.core_type = #tpu.core_type<tc>, window_params = [{transform_indices = @transform_0, window_bounds = array<i64: 2, 32, 256>}, {pipeline_mode = #tpu.pipeline_mode<synchronous>, transform_indices = @transform_1, window_bounds = array<i64: 32, 8>}, {pipeline_mode = #tpu.pipeline_mode<synchronous>, transform_indices = @transform_2, window_bounds = array<i64: 1, 8>}, {pipeline_mode = #tpu.pipeline_mode<synchronous>, transform_indices = @transform_3, window_bounds = array<i64: 8, 32>}, {pipeline_mode = #tpu.pipeline_mode<synchronous>, transform_indices = @transform_4, window_bounds = array<i64: 1, 32>}, {transform_indices = @transform_5, window_bounds = array<i64: 2, 32, 256>}]} {
    %c0 = arith.constant 0 : index
    %c0_0 = arith.constant 0 : index
    %c0_1 = arith.constant 0 : index
    %0 = vector.load %arg1[%c0, %c0_0, %c0_1] : memref<2x32x256xf32, #tpu.memory_space<vmem>>, vector<2x32x256xf32>
    %cst = arith.constant dense<0.000000e+00> : vector<2x32xf32>
    %1 = vector.multi_reduction <add>, %0, %cst [2] : vector<2x32x256xf32> to vector<2x32xf32>
    %cst_2 = arith.constant 3.906250e-03 : f32
    %2 = vector.broadcast %cst_2 : f32 to vector<2x32xf32>
    %3 = arith.mulf %1, %2 : vector<2x32xf32>
    %c0_3 = arith.constant 0 : index
    %c0_4 = arith.constant 0 : index
    %4 = vector.load %arg2[%c0_3, %c0_4] : memref<32x8xf32, #tpu.memory_space<vmem>>, vector<32x8xf32>
    %cst_5 = arith.constant dense<0.000000e+00> : vector<2x8xf32>
    %5 = tpu.matmul %3, %4, %cst_5 {dimension_numbers = #tpu.dot_dimension_numbers<[1], [0], [0], [1], [0, 0, 1, 1], [], []>} : vector<2x32xf32>, vector<32x8xf32>, vector<2x8xf32> -> vector<2x8xf32>
    %c0_6 = arith.constant 0 : index
    %c0_7 = arith.constant 0 : index
    %6 = vector.load %arg3[%c0_6, %c0_7] : memref<1x8xf32, #tpu.memory_space<vmem>>, vector<1x8xf32>
    %7 = vector.broadcast %6 : vector<1x8xf32> to vector<2x8xf32>
    %8 = arith.addf %5, %7 : vector<2x8xf32>
    %cst_8 = arith.constant 0.000000e+00 : f32
    %9 = vector.broadcast %cst_8 : f32 to vector<2x8xf32>
    %10 = arith.maximumf %8, %9 : vector<2x8xf32>
    %c0_9 = arith.constant 0 : index
    %c0_10 = arith.constant 0 : index
    %11 = vector.load %arg4[%c0_9, %c0_10] : memref<8x32xf32, #tpu.memory_space<vmem>>, vector<8x32xf32>
    %cst_11 = arith.constant dense<0.000000e+00> : vector<2x32xf32>
    %12 = tpu.matmul %10, %11, %cst_11 {dimension_numbers = #tpu.dot_dimension_numbers<[1], [0], [0], [1], [0, 0, 1, 1], [], []>} : vector<2x8xf32>, vector<8x32xf32>, vector<2x32xf32> -> vector<2x32xf32>
    %c0_12 = arith.constant 0 : index
    %c0_13 = arith.constant 0 : index
    %13 = vector.load %arg5[%c0_12, %c0_13] : memref<1x32xf32, #tpu.memory_space<vmem>>, vector<1x32xf32>
    %14 = vector.broadcast %13 : vector<1x32xf32> to vector<2x32xf32>
    %15 = arith.addf %12, %14 : vector<2x32xf32>
    %cst_14 = arith.constant 3.000000e+00 : f32
    %16 = vector.broadcast %cst_14 : f32 to vector<2x32xf32>
    %17 = arith.addf %15, %16 : vector<2x32xf32>
    %cst_15 = arith.constant 0.166666672 : f32
    %18 = vector.broadcast %cst_15 : f32 to vector<2x32xf32>
    %19 = arith.mulf %17, %18 : vector<2x32xf32>
    %cst_16 = arith.constant 0.000000e+00 : f32
    %cst_17 = arith.constant 1.000000e+00 : f32
    %20 = vector.broadcast %cst_16 : f32 to vector<2x32xf32>
    %21 = arith.maximumf %20, %19 : vector<2x32xf32>
    %22 = vector.broadcast %cst_17 : f32 to vector<2x32xf32>
    %23 = arith.minimumf %22, %21 : vector<2x32xf32>
    %24 = vector.shape_cast %23 : vector<2x32xf32> to vector<2x32x1xf32>
    %c0_18 = arith.constant 0 : index
    %c0_19 = arith.constant 0 : index
    %c0_20 = arith.constant 0 : index
    %25 = vector.load %arg1[%c0_18, %c0_19, %c0_20] : memref<2x32x256xf32, #tpu.memory_space<vmem>>, vector<2x32x256xf32>
    %26 = vector.broadcast %24 : vector<2x32x1xf32> to vector<2x32x256xf32>
    %27 = arith.mulf %25, %26 : vector<2x32x256xf32>
    %c0_21 = arith.constant 0 : index
    %c0_22 = arith.constant 0 : index
    %c0_23 = arith.constant 0 : index
    %28 = vector.load %arg6[%c0_21, %c0_22, %c0_23] : memref<2x32x256xf32, #tpu.memory_space<vmem>>, vector<2x32x256xf32>
    tpu.vector_store %arg6[%c0_21, %c0_22, %c0_23], %27 {strides = array<i32>} : memref<2x32x256xf32, #tpu.memory_space<vmem>>, vector<2x32x256xf32>,
    return
  }
  func.func @transform_0(%arg0: i32) -> (i32, i32, i32) {
    %c0_i32 = arith.constant 0 : i32
    %c0_i32_0 = arith.constant 0 : i32
    %c0_i32_1 = arith.constant 0 : i32
    return %arg0, %c0_i32, %c0_i32_0 : i32, i32, i32
  }
  func.func @transform_1(%arg0: i32) -> (i32, i32) {
    %c0_i32 = arith.constant 0 : i32
    %c0_i32_0 = arith.constant 0 : i32
    %c0_i32_1 = arith.constant 0 : i32
    return %c0_i32, %c0_i32_0 : i32, i32
  }
  func.func @transform_2(%arg0: i32) -> (i32, i32) {
    %c0_i32 = arith.constant 0 : i32
    %c0_i32_0 = arith.constant 0 : i32
    %c0_i32_1 = arith.constant 0 : i32
    return %c0_i32, %c0_i32_0 : i32, i32
  }
  func.func @transform_3(%arg0: i32) -> (i32, i32) {
    %c0_i32 = arith.constant 0 : i32
    %c0_i32_0 = arith.constant 0 : i32
    %c0_i32_1 = arith.constant 0 : i32
    return %c0_i32, %c0_i32_0 : i32, i32
  }
  func.func @transform_4(%arg0: i32) -> (i32, i32) {
    %c0_i32 = arith.constant 0 : i32
    %c0_i32_0 = arith.constant 0 : i32
    %c0_i32_1 = arith.constant 0 : i32
    return %c0_i32, %c0_i32_0 : i32, i32
  }
  func.func @transform_5(%arg0: i32) -> (i32, i32, i32) {
    %c0_i32 = arith.constant 0 : i32
    %c0_i32_0 = arith.constant 0 : i32
    %c0_i32_1 = arith.constant 0 : i32
    return %arg0, %c0_i32, %c0_i32_0 : i32, i32, i32
  }
}

</mosaic_0001>

<llo_original>
// kernel: se_layer.1
$region0: #{se_layer.1}
  #allocation0 [shape = 'u32[]', space=smem, size = 0x4, offset = 0x4, fixed_abs, tag = 'smem constant byte address 0x4 - core index']
  #allocation1 [shape = 'u32[144,128]{1,0:T(1,128)}', space=vmem, size = 0x12000, scoped, tag = 'internal scratch']
  %s0 = inlined_call_operand.vmem [shape: f32[2,32,256], index: 0, kind: input, shape index: {}]
  %s1 = inlined_call_operand.vmem [shape: f32[32,8], index: 1, kind: input, shape index: {}]
  %s2 = inlined_call_operand.vmem [shape: f32[1,8], index: 2, kind: input, shape index: {}]
  %s3 = inlined_call_operand.vmem [shape: f32[8,32], index: 3, kind: input, shape index: {}]
  %s4 = inlined_call_operand.vmem [shape: f32[1,32], index: 4, kind: input, shape index: {}]
  %s5 = inlined_call_operand.vmem [shape: f32[2,32,256], index: 5, kind: output, shape index: {}]
  %s6 = sld [smem:[#allocation0]]
  $region30: #{se_layer.1} parent=0
    _
  %s8 = ssub.s32 1, %s6
  %s9 = scalar_select 0, %s8, %s6
  // Predicated region
  $region2: #{se_layer.1} parent=0 // pred_check
    _
  $region3: #{se_layer.1} parent=0 // pred_check_branch
    %11 = sbr.rel (0) target = $region5
  $region4: #{se_layer.1} parent=0 // pred_region
    _
  $region5: #{se_layer.1} parent=0 // pred_fallthru
    _
  // Predicated region
  $region6: #{se_layer.1} parent=0 // pred_check
    _
  $region7: #{se_layer.1} parent=0 // pred_check_branch
    %13 = sbr.rel (0) target = $region9
  $region8: #{se_layer.1} parent=0 // pred_region
    _
  $region9: #{se_layer.1} parent=0 // pred_fallthru
    _
  // Predicated region
  $region10: #{se_layer.1} parent=0 // pred_check
    _
  $region11: #{se_layer.1} parent=0 // pred_check_branch
    %15 = sbr.rel (0) target = $region13
  $region12: #{se_layer.1} parent=0 // pred_region
    _
  $region13: #{se_layer.1} parent=0 // pred_fallthru
    _
  // Predicated region
  $region14: #{se_layer.1} parent=0 // pred_check
    _
  $region15: #{se_layer.1} parent=0 // pred_check_branch
    %17 = sbr.rel (0) target = $region17
  $region16: #{se_layer.1} parent=0 // pred_region
    _
  $region17: #{se_layer.1} parent=0 // pred_fallthru
    _
  // Predicated region
  $region18: #{se_layer.1} parent=0 // pred_check
    _
  $region19: #{se_layer.1} parent=0 // pred_check_branch
    %19 = sbr.rel (0) target = $region21
  $region20: #{se_layer.1} parent=0 // pred_region
    _
  $region21: #{se_layer.1} parent=0 // pred_fallthru
    _
  %v20 = vld [vmem:[%s0] sm:$0xff]
  %v21 = vld [vmem:[%s0 + $0x8] sm:$0xff]
  %v22 = vld [vmem:[%s0 + $0x10] sm:$0xff]
  %v23 = vld [vmem:[%s0 + $0x18] sm:$0xff]
  %v24 = vld [vmem:[%s0 + $0x20] sm:$0xff]
  %v25 = vld [vmem:[%s0 + $0x28] sm:$0xff]
  %v26 = vld [vmem:[%s0 + $0x30] sm:$0xff]
  %v27 = vld [vmem:[%s0 + $0x38] sm:$0xff]
  %v28 = vld [vmem:[%s0 + $0x40] sm:$0xff]
  %v29 = vld [vmem:[%s0 + $0x48] sm:$0xff]
  %v30 = vld [vmem:[%s0 + $0x50] sm:$0xff]
  %v31 = vld [vmem:[%s0 + $0x58] sm:$0xff]
  %v32 = vld [vmem:[%s0 + $0x60] sm:$0xff]
  %v33 = vld [vmem:[%s0 + $0x68] sm:$0xff]
  %v34 = vld [vmem:[%s0 + $0x70] sm:$0xff]
  %v35 = vld [vmem:[%s0 + $0x78] sm:$0xff]
  %v36 = vadd.f32 %v20, %v21
  %37 = vadd.xlane.f32.xlu0 %v36
  %v38 = vpop.xlane.xlu0 %37
  %v39 = vadd.f32 %v22, %v23
  %40 = vadd.xlane.f32.xlu0 %v39
  %v41 = vpop.xlane.xlu0 %40
  %v42 = vadd.f32 %v24, %v25
  %43 = vadd.xlane.f32.xlu0 %v42
  %v44 = vpop.xlane.xlu0 %43
  %v45 = vadd.f32 %v26, %v27
  %46 = vadd.xlane.f32.xlu0 %v45
  %v47 = vpop.xlane.xlu0 %46
  %v48 = vadd.f32 %v28, %v29
  %49 = vadd.xlane.f32.xlu0 %v48
  %v50 = vpop.xlane.xlu0 %49
  %v51 = vadd.f32 %v30, %v31
  %52 = vadd.xlane.f32.xlu0 %v51
  %v53 = vpop.xlane.xlu0 %52
  %v54 = vadd.f32 %v32, %v33
  %55 = vadd.xlane.f32.xlu0 %v54
  %v56 = vpop.xlane.xlu0 %55
  %v57 = vadd.f32 %v34, %v35
  %58 = vadd.xlane.f32.xlu0 %v57
  %v59 = vpop.xlane.xlu0 %58
  %v60 = vmul.f32 %v38, 0.00390625
  %v61 = vmul.f32 %v41, 0.00390625
  %v62 = vmul.f32 %v44, 0.00390625
  %v63 = vmul.f32 %v47, 0.00390625
  %v64 = vmul.f32 %v50, 0.00390625
  %v65 = vmul.f32 %v53, 0.00390625
  %v66 = vmul.f32 %v56, 0.00390625
  %v67 = vmul.f32 %v59, 0.00390625
  %v68 = vld [vmem:[%s1] sm:$0xff]
  %v69 = vld [vmem:[%s1 + $0x8] sm:$0xff]
  %v70 = vld [vmem:[%s1 + $0x10] sm:$0xff]
  %v71 = vld [vmem:[%s1 + $0x18] sm:$0xff]
  %v72 = vld [vmem:[%s2] sm:$0x1]
  %v74 = vlaneseq
  %v75 = vshrl.u32 %v74, 7
  %v76 = vsub.s32 0, %v75
  %v77 = vrot.slane %v72, %v76
  %v87 = vlaneseq
  %v88 = vand.u32 %v87, 127
  %v89 = vlaneseq
  %v90 = vshrl.u32 %v89, 7
  %v91 = vsub.s32 %v88, %v90
  %v92 = vrot.slane %v60, %v91
  %v93 = vadd.s32 %v88, 4294967288
  %v94 = vlaneseq
  %v95 = vshrl.u32 %v94, 7
  %v96 = vsub.s32 %v93, %v95
  %v97 = vrot.slane %v61, %v96
  %vm98 = vcmask 130112
  %v99 = vsel %vm98, %v97, %v92
  %v100 = vadd.s32 %v88, 4294967280
  %v101 = vlaneseq
  %v102 = vshrl.u32 %v101, 7
  %v103 = vsub.s32 %v100, %v102
  %v104 = vrot.slane %v62, %v103
  %vm105 = vcmask 195712
  %v106 = vsel %vm105, %v104, %v99
  %v107 = vadd.s32 %v88, 4294967272
  %v108 = vlaneseq
  %v109 = vshrl.u32 %v108, 7
  %v110 = vsub.s32 %v107, %v109
  %v111 = vrot.slane %v63, %v110
  %vm112 = vcmask 261312
  %v113 = vsel %vm112, %v111, %v106
  %v114 = vlaneseq
  %v115 = vshrl.u32 %v114, 7
  %v116 = vsub.s32 %v88, %v115
  %v117 = vrot.slane %v64, %v116
  %v118 = vlaneseq
  %v119 = vshrl.u32 %v118, 7
  %v120 = vsub.s32 %v93, %v119
  %v121 = vrot.slane %v65, %v120
  %v122 = vsel %vm98, %v121, %v117
  %v123 = vlaneseq
  %v124 = vshrl.u32 %v123, 7
  %v125 = vsub.s32 %v100, %v124
  %v126 = vrot.slane %v66, %v125
  %v127 = vsel %vm105, %v126, %v122
  %v128 = vlaneseq
  %v129 = vshrl.u32 %v128, 7
  %v130 = vsub.s32 %v107, %v129
  %v131 = vrot.slane %v67, %v130
  %v132 = vsel %vm112, %v131, %v127
  %vm133 = vcmask 1041409
  %v134 = vsel %vm133, %v132, %v113
  %vm135 = vcmask 261120
  %v136 = vsel %vm135, %v134, 0
  %138 = vmatprep.subr.mxu0 0.0
  %139 = vmatpush1.msra.mxu0 0.0
  %140 = vmatprep.subr.mxu0 0.0
  %141 = vmatpush1.msra.mxu0 0.0
  %142 = vmatprep.subr.mxu0 0.0
  %143 = vmatpush1.msra.mxu0 0.0
  %144 = vmatprep.subr.mxu0 0.0
  %145 = vmatpush1.msra.mxu0 0.0
  %146 = vmatprep.subr.mxu0 0.0
  %147 = vmatpush1.msra.mxu0 0.0
  %148 = vmatprep.subr.mxu0 0.0
  %149 = vmatpush1.msra.mxu0 0.0
  %150 = vmatprep.subr.mxu0 0.0
  %151 = vmatpush1.msra.mxu0 0.0
  %152 = vmatprep.subr.mxu0 0.0
  %153 = vmatpush1.msra.mxu0 0.0
  %154 = vmatprep.subr.mxu0 0.0
  %155 = vmatpush1.msra.mxu0 0.0
  %156 = vmatprep.subr.mxu0 0.0
  %157 = vmatpush1.msra.mxu0 0.0
  %158 = vmatprep.subr.mxu0 0.0
  %159 = vmatpush1.msra.mxu0 0.0
  %160 = vmatprep.subr.mxu0 0.0
  %161 = vmatpush1.msra.mxu0 0.0
  %162 = vmatprep.subr.mxu0 0.0
  %163 = vmatpush1.msra.mxu0 %v71
  %164 = vmatprep.subr.mxu0 0.0
  %165 = vmatpush1.msra.mxu0 %v70
  %166 = vmatprep.subr.mxu0 0.0
  %167 = vmatpush1.msra.mxu0 %v69
  %168 = vmatprep.subr.mxu0 0.0
  %169 = vmatpush1.msra.mxu0 %v68
  %170 = vmatprep.subr.mxu0 0.0
  %171 = vmatpush2.msra.mxu0 0.0
  %172 = vmatprep.subr.mxu0 0.0
  %173 = vmatpush2.msra.mxu0 0.0
  %174 = vmatprep.subr.mxu0 0.0
  %175 = vmatpush2.msra.mxu0 0.0
  %176 = vmatprep.subr.mxu0 0.0
  %177 = vmatpush2.msra.mxu0 0.0
  %178 = vmatprep.subr.mxu0 0.0
  %179 = vmatpush2.msra.mxu0 0.0
  %180 = vmatprep.subr.mxu0 0.0
  %181 = vmatpush2.msra.mxu0 0.0
  %182 = vmatprep.subr.mxu0 0.0
  %183 = vmatpush2.msra.mxu0 0.0
  %184 = vmatprep.subr.mxu0 0.0
  %185 = vmatpush2.msra.mxu0 0.0
  %186 = vmatprep.subr.mxu0 0.0
  %187 = vmatpush2.msra.mxu0 0.0
  %188 = vmatprep.subr.mxu0 0.0
  %189 = vmatpush2.msra.mxu0 0.0
  %190 = vmatprep.subr.mxu0 0.0
  %191 = vmatpush2.msra.mxu0 0.0
  %192 = vmatprep.subr.mxu0 0.0
  %193 = vmatpush2.msra.mxu0 0.0
  %194 = vmatprep.subr.mxu0 0.0
  %195 = vmatpush2.msra.mxu0 0.0
  %196 = vmatprep.subr.mxu0 0.0
  %197 = vmatpush2.msra.mxu0 0.0
  %198 = vmatprep.subr.mxu0 0.0
  %199 = vmatpush2.msra.mxu0 0.0
  %200 = vmatprep.subr.mxu0 0.0
  %201 = vmatpush2.msra.mxu0 0.0
  %202 = vmatprep.mubr.f32.mxu0 0.0
  %203 = vmatmul.mubr.f32.gmra.mxu0 %v136
  %v204 = vpop.f32.mrf.mxu0
  %v205 = vadd.f32 %v77, %v204
  %v206 = vpop.f32.mrf.mxu0
  %207 = vdwg.mxu0
  %v208 = vmax.f32 %v205, 0.0
  %v209 = vld [vmem:[%s3] sm:$0xff]
  %v210 = vld [vmem:[%s4] sm:$0x1]
  %v212 = vlaneseq
  %v213 = vshrl.u32 %v212, 7
  %v214 = vsub.s32 0, %v213
  %v215 = vrot.slane %v210, %v214
  %vm217 = vcmask 64512
  %v219 = vsel %vm217, %v208, 0
  %221 = vmatprep.subr.mxu0 0.0
  %222 = vmatpush1.msra.mxu0 0.0
  %223 = vmatprep.subr.mxu0 0.0
  %224 = vmatpush1.msra.mxu0 0.0
  %225 = vmatprep.subr.mxu0 0.0
  %226 = vmatpush1.msra.mxu0 0.0
  %227 = vmatprep.subr.mxu0 0.0
  %228 = vmatpush1.msra.mxu0 0.0
  %229 = vmatprep.subr.mxu0 0.0
  %230 = vmatpush1.msra.mxu0 0.0
  %231 = vmatprep.subr.mxu0 0.0
  %232 = vmatpush1.msra.mxu0 0.0
  %233 = vmatprep.subr.mxu0 0.0
  %234 = vmatpush1.msra.mxu0 0.0
  %235 = vmatprep.subr.mxu0 0.0
  %236 = vmatpush1.msra.mxu0 0.0
  %237 = vmatprep.subr.mxu0 0.0
  %238 = vmatpush1.msra.mxu0 0.0
  %239 = vmatprep.subr.mxu0 0.0
  %240 = vmatpush1.msra.mxu0 0.0
  %241 = vmatprep.subr.mxu0 0.0
  %242 = vmatpush1.msra.mxu0 0.0
  %243 = vmatprep.subr.mxu0 0.0
  %244 = vmatpush1.msra.mxu0 0.0
  %245 = vmatprep.subr.mxu0 0.0
  %246 = vmatpush1.msra.mxu0 0.0
  %247 = vmatprep.subr.mxu0 0.0
  %248 = vmatpush1.msra.mxu0 0.0
  %249 = vmatprep.subr.mxu0 0.0
  %250 = vmatpush1.msra.mxu0 0.0
  %251 = vmatprep.subr.mxu0 0.0
  %252 = vmatpush1.msra.mxu0 %v209
  %253 = vmatprep.subr.mxu0 0.0
  %254 = vmatpush2.msra.mxu0 0.0
  %255 = vmatprep.subr.mxu0 0.0
  %256 = vmatpush2.msra.mxu0 0.0
  %257 = vmatprep.subr.mxu0 0.0
  %258 = vmatpush2.msra.mxu0 0.0
  %259 = vmatprep.subr.mxu0 0.0
  %260 = vmatpush2.msra.mxu0 0.0
  %261 = vmatprep.subr.mxu0 0.0
  %262 = vmatpush2.msra.mxu0 0.0
  %263 = vmatprep.subr.mxu0 0.0
  %264 = vmatpush2.msra.mxu0 0.0
  %265 = vmatprep.subr.mxu0 0.0
  %266 = vmatpush2.msra.mxu0 0.0
  %267 = vmatprep.subr.mxu0 0.0
  %268 = vmatpush2.msra.mxu0 0.0
  %269 = vmatprep.subr.mxu0 0.0
  %270 = vmatpush2.msra.mxu0 0.0
  %271 = vmatprep.subr.mxu0 0.0
  %272 = vmatpush2.msra.mxu0 0.0
  %273 = vmatprep.subr.mxu0 0.0
  %274 = vmatpush2.msra.mxu0 0.0
  %275 = vmatprep.subr.mxu0 0.0
  %276 = vmatpush2.msra.mxu0 0.0
  %277 = vmatprep.subr.mxu0 0.0
  %278 = vmatpush2.msra.mxu0 0.0
  %279 = vmatprep.subr.mxu0 0.0
  %280 = vmatpush2.msra.mxu0 0.0
  %281 = vmatprep.subr.mxu0 0.0
  %282 = vmatpush2.msra.mxu0 0.0
  %283 = vmatprep.subr.mxu0 0.0
  %284 = vmatpush2.msra.mxu0 0.0
  %285 = vmatprep.mubr.f32.mxu0 0.0
  %286 = vmatmul.mubr.f32.gmra.mxu0 %v219
  %v287 = vpop.f32.mrf.mxu0
  %v288 = vadd.f32 %v215, %v287
  %v289 = vpop.f32.mrf.mxu0
  %290 = vdwg.mxu0
  %v291 = vadd.f32 %v288, 3.0
  %v292 = vmul.f32 %v291, 0.16666667
  %v293 = vmax.f32 %v292, 0.0
  %v294 = vmin.f32 %v293, 1.0
  %v295 = vlaneseq
  %v296 = vshrl.u32 %v295, 7
  %v297 = vsub.s32 0, %v296
  %v298 = vrot.slane %v294, %v297
  %300 = vbcast.lane.b32.xlu0 %v298, 256
  %v301 = vpop.permute.xlu0 %300
  %s303 = sor.u32 256, 8
  %304 = vbcast.lane.b32.xlu0 %v298, %s303
  %v305 = vpop.permute.xlu0 %304
  %s307 = sor.u32 256, 16
  %308 = vbcast.lane.b32.xlu0 %v298, %s307
  %v309 = vpop.permute.xlu0 %308
  %s311 = sor.u32 256, 24
  %312 = vbcast.lane.b32.xlu0 %v298, %s311
  %v313 = vpop.permute.xlu0 %312
  %v314 = vlaneseq
  %v315 = vshrl.u32 %v314, 7
  %v316 = vsub.s32 1, %v315
  %v317 = vrot.slane %v294, %v316
  %319 = vbcast.lane.b32.xlu0 %v317, 256
  %v320 = vpop.permute.xlu0 %319
  %s322 = sor.u32 256, 8
  %323 = vbcast.lane.b32.xlu0 %v317, %s322
  %v324 = vpop.permute.xlu0 %323
  %s326 = sor.u32 256, 16
  %327 = vbcast.lane.b32.xlu0 %v317, %s326
  %v328 = vpop.permute.xlu0 %327
  %s330 = sor.u32 256, 24
  %331 = vbcast.lane.b32.xlu0 %v317, %s330
  %v332 = vpop.permute.xlu0 %331
  %v333 = vmul.f32 %v20, %v301
  %v334 = vmul.f32 %v21, %v301
  %v335 = vmul.f32 %v22, %v305
  %v336 = vmul.f32 %v23, %v305
  %v337 = vmul.f32 %v24, %v309
  %v338 = vmul.f32 %v25, %v309
  %v339 = vmul.f32 %v26, %v313
  %v340 = vmul.f32 %v27, %v313
  %v341 = vmul.f32 %v28, %v320
  %v342 = vmul.f32 %v29, %v320
  %v343 = vmul.f32 %v30, %v324
  %v344 = vmul.f32 %v31, %v324
  %v345 = vmul.f32 %v32, %v328
  %v346 = vmul.f32 %v33, %v328
  %v347 = vmul.f32 %v34, %v332
  %v348 = vmul.f32 %v35, %v332
  %349 = vst [vmem:[%s5] sm:$0xff] %v333
  %350 = vst [vmem:[%s5 + $0x8] sm:$0xff] %v334
  %351 = vst [vmem:[%s5 + $0x10] sm:$0xff] %v335
  %352 = vst [vmem:[%s5 + $0x18] sm:$0xff] %v336
  %353 = vst [vmem:[%s5 + $0x20] sm:$0xff] %v337
  %354 = vst [vmem:[%s5 + $0x28] sm:$0xff] %v338
  %355 = vst [vmem:[%s5 + $0x30] sm:$0xff] %v339
  %356 = vst [vmem:[%s5 + $0x38] sm:$0xff] %v340
  %357 = vst [vmem:[%s5 + $0x40] sm:$0xff] %v341
  %358 = vst [vmem:[%s5 + $0x48] sm:$0xff] %v342
  %359 = vst [vmem:[%s5 + $0x50] sm:$0xff] %v343
  %360 = vst [vmem:[%s5 + $0x58] sm:$0xff] %v344
  %361 = vst [vmem:[%s5 + $0x60] sm:$0xff] %v345
  %362 = vst [vmem:[%s5 + $0x68] sm:$0xff] %v346
  %363 = vst [vmem:[%s5 + $0x70] sm:$0xff] %v347
  %364 = vst [vmem:[%s5 + $0x78] sm:$0xff] %v348
  // Predicated region
  $region22: #{se_layer.1} parent=0 // pred_check
    _
  $region23: #{se_layer.1} parent=0 // pred_check_branch
    %366 = sbr.rel (0) target = $region25
  $region24: #{se_layer.1} parent=0 // pred_region
    _
  $region25: #{se_layer.1} parent=0 // pred_fallthru
    _
  // Predicated region
  $region26: #{se_layer.1} parent=0 // pred_check
    _
  $region27: #{se_layer.1} parent=0 // pred_check_branch
    %368 = sbr.rel (0) target = $region29
  $region28: #{se_layer.1} parent=0 // pred_region
    _
  $region29: #{se_layer.1} parent=0 // pred_fallthru
    _

</llo_original>
